<compile_context>
chip_gen: v7x
topology: tpu7x:2x2x1
jax: 0.10.0
libtpu: 0.0.40
codegen_flags: <defaults>
</compile_context>

<pallas_src>
import jax
import jax.numpy as jnp
from jax.experimental import pallas as pl
from jax.experimental.pallas import tpu as pltpu


def _round_up(x, m):
    return ((x + m - 1) // m) * m


def _choose_tb(B, tb_max):
    """Batch-tile size: multiple of 128 (or the full B), >=2 tiles when B>=256."""
    assert tb_max % 128 == 0 and tb_max > 0
    if B < 256:
        return B                                   # single full-B tile
    return min(tb_max, _round_up(pl.cdiv(B, 2), 128))


def _choose_nj(n, TB, Hmax, budget_bytes=8 << 20):
    """How many action samples to fold into the matmul M dimension.

    NJ must be == n or a multiple of 8 so the (NJ, TB) output block satisfies
    the (8, 128) sublane/lane rule.
    """
    per = max(1, TB * Hmax * 4)                    # f32 intermediate per sample
    cap = budget_bytes // per
    if n <= cap:
        return n
    return min(n, max(8, (cap // 8) * 8))


# ----------------------------------------------------------------------------
# Pallas kernel: fused 3-layer MLP  (Linear -> ReLU -> Linear -> ReLU -> Linear)
# Grid: (num_batch_tiles, num_sample_blocks)
#   axis 0 (i): batch tile, "parallel"  (megacore sharding on v7x)
#   axis 1 (j): block of NJ action samples, "arbitrary" (innermost; reuses the
#               s@W1_s scratch computed at j == 0)
# ----------------------------------------------------------------------------
def _critic_mlp_kernel(s_ref, a_ref, w1s_ref, w1a_ref, b1_ref,
                       w2_ref, b2_ref, w3_ref, b3_ref,
                       o_ref, hs_ref):
    j = pl.program_id(1)                           # sample-block index

    # s @ W1_s + b1 is independent of the sample index -> compute once per
    # batch tile and keep it resident in f32 VMEM scratch.
    @pl.when(j == 0)
    def _():
        hs_ref[...] = (
            jnp.dot(s_ref[...].astype(jnp.bfloat16), w1s_ref[...],
                    preferred_element_type=jnp.float32)
            + b1_ref[...]
        )

    nj, tb, act_dim = a_ref.shape
    h1p = hs_ref.shape[-1]

    # Layer 1 (action part), folded over NJ samples -> tall M for the MXU.
    a_flat = a_ref[...].astype(jnp.bfloat16).reshape(nj * tb, act_dim)
    h1 = jnp.dot(a_flat, w1a_ref[...], preferred_element_type=jnp.float32)
    h1 = h1.reshape(nj, tb, h1p) + hs_ref[...][None, :, :]     # add s-part + b1
    h1 = jnp.maximum(h1, 0.0).astype(jnp.bfloat16).reshape(nj * tb, h1p)

    # Layer 2.
    h2 = jnp.dot(h1, w2_ref[...], preferred_element_type=jnp.float32) + b2_ref[...]
    h2 = jnp.maximum(h2, 0.0).astype(jnp.bfloat16)             # (nj*tb, H2p)

    # Layer 3 (output_size == 1): per folded sample, contract w3_row [1, H2p]
    # against the sample's [TB, H2p] slab on the H2 axis -> lane-dense [1, TB]
    # row, written to its own sublane of the (NJ, TB) output block.
    for jj in range(nj):                                        # static unroll
        h_j = h2[jj * tb:(jj + 1) * tb, :]
        q_row = jax.lax.dot_general(
            w3_ref[...], h_j, (((1,), (1,)), ((), ())),
            preferred_element_type=jnp.float32) + b3_ref[...]
        o_ref[pl.ds(jj, 1), :] = q_row.astype(o_ref.dtype)


def _critic_mlp_pallas(s, a, w1s, w1a, b1, w2, b2, w3_row, b3, *, tb_max=1024):
    """s: [B, obs_dim] f32, a: [n, B, act_dim] f32  ->  q: [n, B] f32."""
    n, B, act_dim = a.shape
    obs_dim = s.shape[-1]
    H1p = w1s.shape[1]
    H2p = w2.shape[1]

    TB = _choose_tb(B, tb_max)
    num_tiles = pl.cdiv(B, TB)
    NJ = _choose_nj(n, TB, max(H1p, H2p))
    num_sblocks = pl.cdiv(n, NJ)

    # Rough VMEM budget (double-buffered inputs/outputs + resident weights +
    # scratch + activation headroom), clamped to [32 MiB, 64 MiB] so it is safe
    # on every generation (v7x: 64 MiB physical per TC).
    weight_bytes = ((w1s.size + w1a.size + w2.size + w3_row.size) * 2
                    + (b1.size + b2.size + b3.size) * 4)
    est = (2 * TB * obs_dim * 4
           + 2 * NJ * TB * act_dim * 4
           + 2 * NJ * TB * 4
           + 2 * weight_bytes
           + TB * H1p * 4
           + 6 * NJ * TB * max(H1p, H2p) * 4)
    vmem_limit = int(min(64 * 1024 * 1024, max(32 * 1024 * 1024, est)))

    out = pl.pallas_call(
        _critic_mlp_kernel,
        out_shape=jax.ShapeDtypeStruct((n, B), jnp.float32),
        grid=(num_tiles, num_sblocks),
        in_specs=[
            pl.BlockSpec((TB, obs_dim),      lambda i, j: (i, 0)),      # s tile
            pl.BlockSpec((NJ, TB, act_dim),  lambda i, j: (j, i, 0)),   # a tile
            pl.BlockSpec((obs_dim, H1p),     lambda i, j: (0, 0)),      # W1_s (bf16)
            pl.BlockSpec((act_dim, H1p),     lambda i, j: (0, 0)),      # W1_a (bf16)
            pl.BlockSpec((1, H1p),           lambda i, j: (0, 0)),      # b1   (f32)
            pl.BlockSpec((H1p, H2p),         lambda i, j: (0, 0)),      # W2   (bf16)
            pl.BlockSpec((1, H2p),           lambda i, j: (0, 0)),      # b2   (f32)
            pl.BlockSpec((1, H2p),           lambda i, j: (0, 0)),      # w3 row (bf16)
            pl.BlockSpec((1, 1),             lambda i, j: (0, 0)),      # b3   (f32)
        ],
        out_specs=pl.BlockSpec((NJ, TB), lambda i, j: (j, i)),
        scratch_shapes=[pltpu.VMEM((TB, H1p), jnp.float32)],
        compiler_params=pltpu.CompilerParams(
            dimension_semantics=("parallel", "arbitrary"),
            vmem_limit_bytes=vmem_limit),
    )(s, a, w1s, w1a, b1, w2, b2, w3_row, b3)
    return out


# ----------------------------------------------------------------------------
# CriticFC module (parameter container + forward glue)
# ----------------------------------------------------------------------------
class CriticFC:
    def __init__(self, obs_dim, act_dim, hidden_sizes, output_size=1, seed=0,
                 tb_max=1024):
        # TODO(synk): act_dim == 0 (state-only critic), output_size > 1 and a
        # configurable `activation` are not wired into the fused kernel; mbfq
        # uses act_dim > 0, output_size == 1 and ReLU.
        assert act_dim > 0, "fused kernel expects a state-action critic"
        assert output_size == 1, "fused lane-dense kernel assumes output_size=1"
        self.actions = act_dim
        self.obs_dim = obs_dim
        self.tb_max = tb_max

        sizes = [obs_dim + act_dim] + list(hidden_sizes) + [output_size]
        assert len(sizes) == 4, "kernel is fused for exactly two hidden layers"

        key = jax.random.PRNGKey(seed)
        params = []
        for j in range(len(sizes) - 1):
            key, kw, kb = jax.random.split(key, 3)
            fan_in = sizes[j]
            bound = 1.0 / (fan_in ** 0.5)          # torch nn.Linear default init
            w = jax.random.uniform(kw, (sizes[j], sizes[j + 1]),
                                   jnp.float32, -bound, bound)
            b = jax.random.uniform(kb, (1, sizes[j + 1]),
                                   jnp.float32, -bound, bound)
            params.append((w, b))
        self._dense_params = params                 # f32, for the pure-JAX reference

        (w1, b1), (w2, b2), (w3, b3) = params
        H1, H2 = hidden_sizes
        H1p, H2p = _round_up(H1, 128), _round_up(H2, 128)

        # Lane-pad the hidden dims with zeros (relu(0)=0 and zero rows/cols of
        # the next weight keep the padded channels inert), split W1 by input
        # feature so concat(s, a) never materializes, and store weights in
        # bf16 (f32 accumulation happens inside the kernel).
        w1p = jnp.pad(w1, ((0, 0), (0, H1p - H1)))
        self.w1_s = w1p[:obs_dim].astype(jnp.bfloat16)                 # [obs, H1p]
        self.w1_a = w1p[obs_dim:].astype(jnp.bfloat16)                 # [act, H1p]
        self.b1 = jnp.pad(b1, ((0, 0), (0, H1p - H1)))                 # [1, H1p] f32
        self.w2 = jnp.pad(w2, ((0, H1p - H1), (0, H2p - H2))).astype(jnp.bfloat16)
        self.b2 = jnp.pad(b2, ((0, 0), (0, H2p - H2)))                 # [1, H2p] f32
        self.w3_row = jnp.pad(w3.T, ((0, 0), (0, H2p - H2))).astype(jnp.bfloat16)
        self.b3 = b3.reshape(1, 1)                                     # [1, 1] f32

    # TODO(synk): forward_tag (autograd.grad of Q w.r.t. actions) needs a
    # custom VJP / dedicated backward kernel; not implemented here.
    def forward(self, s, a=None):
        assert a is not None
        shape = s.shape
        if a.ndim > s.ndim:
            # a: [n, b, act_dim], s: [b, obs_dim] — broadcast fused into kernel.
            shape = a.shape
            a3 = a
        else:
            a3 = a[None, :, :]                       # n = 1
        q = _critic_mlp_pallas(s, a3, self.w1_s, self.w1_a, self.b1,
                               self.w2, self.b2, self.w3_row, self.b3,
                               tb_max=self.tb_max)   # [n, B]
        # output_size == 1: matches q.view(*shape[:-1], -1).squeeze(-1)
        return q.reshape(shape[:-1])


# ----------------------------------------------------------------------------
# Pure-JAX f32 reference for correctness checking (bf16 kernel -> loose tol)
# ----------------------------------------------------------------------------
def _ref_forward(critic, s, a):
    shape = s.shape
    if a.ndim > s.ndim:
        shape = a.shape
        n, b, _ = shape
        s = jnp.broadcast_to(s[None, :, :], (n, b, s.shape[-1]))
        x = jnp.concatenate([s, a], axis=-1).reshape(n * b, -1)
    else:
        x = jnp.concatenate([s, a], axis=-1)
    (w1, b1), (w2, b2), (w3, b3) = critic._dense_params
    h = jnp.maximum(x @ w1 + b1, 0.0)
    h = jnp.maximum(h @ w2 + b2, 0.0)
    q = h @ w3 + b3
    return jnp.squeeze(q.reshape(*shape[:-1], -1), axis=-1)


if __name__ == "__main__":
    obs_dim, act_dim = 16, 8
    hidden_sizes = (32, 32)
    batch, n_samples = 8, 2

    critic = CriticFC(obs_dim, act_dim, hidden_sizes, output_size=1, seed=0)

    key = jax.random.PRNGKey(0)
    ks, ka, ka2, ks_big, ka_big = jax.random.split(key, 5)
    s = jax.random.normal(ks, (batch, obs_dim), jnp.float32)
    a = jax.random.normal(ka, (batch, act_dim), jnp.float32)
    a_multi = jax.random.normal(ka2, (n_samples, batch, act_dim), jnp.float32)

    TOL = 5e-2   # bf16 weights/activations vs. f32 reference

    # 1) Standard case: s [B, obs], a [B, act] -> q [B]
    q = critic.forward(s, a)
    jax.block_until_ready(q)
    q_ref = _ref_forward(critic, s, a)
    assert q.shape == (batch,)
    assert jnp.allclose(q, q_ref, atol=TOL, rtol=TOL)

    # 2) Broadcast case: a [n, B, act] -> q [n, B]  (n samples folded into M)
    q2 = critic.forward(s, a_multi)
    jax.block_until_ready(q2)
    q2_ref = _ref_forward(critic, s, a_multi)
    assert q2.shape == (n_samples, batch)
    assert jnp.allclose(q2, q2_ref, atol=TOL, rtol=TOL)

    # 3) Larger batch: exercises the multi-tile pipelined path with a ragged
    #    last block (B=640 -> TB=384, grid=(2, 1), NJ=3 samples folded).
    big_b, big_n = 640, 3
    s_big = jax.random.normal(ks_big, (big_b, obs_dim), jnp.float32)
    a_big = jax.random.normal(ka_big, (big_n, big_b, act_dim), jnp.float32)
    q3 = critic.forward(s_big, a_big)
    jax.block_until_ready(q3)
    q3_ref = _ref_forward(critic, s_big, a_big)
    assert q3.shape == (big_n, big_b)
    assert jnp.allclose(q3, q3_ref, atol=TOL, rtol=TOL)

    print("KERNEL_OK")
</pallas_src>

<mosaic_0001>
module attributes {stable_mosaic.version = 11 : i64} {
  func.func @_critic_mlp_kernel(%arg0: i32, %arg1: i32, %arg2: memref<8x16xf32, #tpu.memory_space<vmem>>, %arg3: memref<1x8x8xf32, #tpu.memory_space<vmem>>, %arg4: memref<16x128xbf16, #tpu.memory_space<vmem>>, %arg5: memref<8x128xbf16, #tpu.memory_space<vmem>>, %arg6: memref<1x128xf32, #tpu.memory_space<vmem>>, %arg7: memref<128x128xbf16, #tpu.memory_space<vmem>>, %arg8: memref<1x128xf32, #tpu.memory_space<vmem>>, %arg9: memref<1x128xbf16, #tpu.memory_space<vmem>>, %arg10: memref<1x1xf32, #tpu.memory_space<vmem>>, %arg11: memref<1x8xf32, #tpu.memory_space<vmem>>, %arg12: memref<8x128xf32, #tpu.memory_space<vmem>>) attributes {dimension_semantics = [#tpu.dimension_semantics<parallel>, #tpu.dimension_semantics<arbitrary>], iteration_bounds = array<i64: 1, 1>, scalar_prefetch = 0 : i64, scratch_operands = 1 : i64, tpu.core_type = #tpu.core_type<tc>, window_params = [{transform_indices = @transform_0, window_bounds = array<i64: 8, 16>}, {transform_indices = @transform_1, window_bounds = array<i64: 1, 8, 8>}, {pipeline_mode = #tpu.pipeline_mode<synchronous>, transform_indices = @transform_2, window_bounds = array<i64: 16, 128>}, {pipeline_mode = #tpu.pipeline_mode<synchronous>, transform_indices = @transform_3, window_bounds = array<i64: 8, 128>}, {pipeline_mode = #tpu.pipeline_mode<synchronous>, transform_indices = @transform_4, window_bounds = array<i64: 1, 128>}, {pipeline_mode = #tpu.pipeline_mode<synchronous>, transform_indices = @transform_5, window_bounds = array<i64: 128, 128>}, {pipeline_mode = #tpu.pipeline_mode<synchronous>, transform_indices = @transform_6, window_bounds = array<i64: 1, 128>}, {pipeline_mode = #tpu.pipeline_mode<synchronous>, transform_indices = @transform_7, window_bounds = array<i64: 1, 128>}, {pipeline_mode = #tpu.pipeline_mode<synchronous>, transform_indices = @transform_8, window_bounds = array<i64: 1, 1>}, {transform_indices = @transform_9, window_bounds = array<i64: 1, 8>}]} {
    %c0_i32 = arith.constant 0 : i32
    %0 = arith.cmpi eq, %arg1, %c0_i32 : i32
    %1 = arith.extui %0 : i1 to i32
    %c0_i32_0 = arith.constant 0 : i32
    %2 = arith.cmpi ne, %1, %c0_i32_0 : i32
    scf.if %2 {
      %c0_21 = arith.constant 0 : index
      %c0_22 = arith.constant 0 : index
      %30 = vector.load %arg2[%c0_21, %c0_22] : memref<8x16xf32, #tpu.memory_space<vmem>>, vector<8x16xf32>
      %31 = arith.truncf %30 : vector<8x16xf32> to vector<8x16xbf16>
      %c0_23 = arith.constant 0 : index
      %c0_24 = arith.constant 0 : index
      %32 = vector.load %arg4[%c0_23, %c0_24] : memref<16x128xbf16, #tpu.memory_space<vmem>>, vector<16x128xbf16>
      %cst_25 = arith.constant dense<0.000000e+00> : vector<8x128xf32>
      %33 = tpu.matmul %31, %32, %cst_25 {dimension_numbers = #tpu.dot_dimension_numbers<[1], [0], [0], [1], [0, 0, 1, 1], [], []>} : vector<8x16xbf16>, vector<16x128xbf16>, vector<8x128xf32> -> vector<8x128xf32>
      %c0_26 = arith.constant 0 : index
      %c0_27 = arith.constant 0 : index
      %34 = vector.load %arg6[%c0_26, %c0_27] : memref<1x128xf32, #tpu.memory_space<vmem>>, vector<1x128xf32>
      %35 = vector.broadcast %34 : vector<1x128xf32> to vector<8x128xf32>
      %36 = arith.addf %33, %35 : vector<8x128xf32>
      %c0_28 = arith.constant 0 : index
      %c0_29 = arith.constant 0 : index
      %37 = vector.load %arg12[%c0_28, %c0_29] : memref<8x128xf32, #tpu.memory_space<vmem>>, vector<8x128xf32>
      tpu.vector_store %arg12[%c0_28, %c0_29], %36 {strides = array<i32>} : memref<8x128xf32, #tpu.memory_space<vmem>>, vector<8x128xf32>,
    } else {
    }
    %c0 = arith.constant 0 : index
    %c0_1 = arith.constant 0 : index
    %c0_2 = arith.constant 0 : index
    %3 = vector.load %arg3[%c0, %c0_1, %c0_2] : memref<1x8x8xf32, #tpu.memory_space<vmem>>, vector<1x8x8xf32>
    %4 = arith.truncf %3 : vector<1x8x8xf32> to vector<1x8x8xbf16>
    %5 = vector.shape_cast %4 : vector<1x8x8xbf16> to vector<8x8xbf16>
    %c0_3 = arith.constant 0 : index
    %c0_4 = arith.constant 0 : index
    %6 = vector.load %arg5[%c0_3, %c0_4] : memref<8x128xbf16, #tpu.memory_space<vmem>>, vector<8x128xbf16>
    %cst = arith.constant dense<0.000000e+00> : vector<8x128xf32>
    %7 = tpu.matmul %5, %6, %cst {dimension_numbers = #tpu.dot_dimension_numbers<[1], [0], [0], [1], [0, 0, 1, 1], [], []>} : vector<8x8xbf16>, vector<8x128xbf16>, vector<8x128xf32> -> vector<8x128xf32>
    %8 = vector.shape_cast %7 : vector<8x128xf32> to vector<1x8x128xf32>
    %c0_5 = arith.constant 0 : index
    %c0_6 = arith.constant 0 : index
    %9 = vector.load %arg12[%c0_5, %c0_6] : memref<8x128xf32, #tpu.memory_space<vmem>>, vector<8x128xf32>
    %10 = vector.shape_cast %9 : vector<8x128xf32> to vector<1x8x128xf32>
    %11 = arith.addf %8, %10 : vector<1x8x128xf32>
    %cst_7 = arith.constant 0.000000e+00 : f32
    %12 = vector.broadcast %cst_7 : f32 to vector<1x8x128xf32>
    %13 = arith.maximumf %11, %12 : vector<1x8x128xf32>
    %14 = arith.truncf %13 : vector<1x8x128xf32> to vector<1x8x128xbf16>
    %15 = vector.shape_cast %14 : vector<1x8x128xbf16> to vector<8x128xbf16>
    %c0_8 = arith.constant 0 : index
    %c0_9 = arith.constant 0 : index
    %16 = vector.load %arg7[%c0_8, %c0_9] : memref<128x128xbf16, #tpu.memory_space<vmem>>, vector<128x128xbf16>
    %cst_10 = arith.constant dense<0.000000e+00> : vector<8x128xf32>
    %17 = tpu.matmul %15, %16, %cst_10 {dimension_numbers = #tpu.dot_dimension_numbers<[1], [0], [0], [1], [0, 0, 1, 1], [], []>} : vector<8x128xbf16>, vector<128x128xbf16>, vector<8x128xf32> -> vector<8x128xf32>
    %c0_11 = arith.constant 0 : index
    %c0_12 = arith.constant 0 : index
    %18 = vector.load %arg8[%c0_11, %c0_12] : memref<1x128xf32, #tpu.memory_space<vmem>>, vector<1x128xf32>
    %19 = vector.broadcast %18 : vector<1x128xf32> to vector<8x128xf32>
    %20 = arith.addf %17, %19 : vector<8x128xf32>
    %cst_13 = arith.constant 0.000000e+00 : f32
    %21 = vector.broadcast %cst_13 : f32 to vector<8x128xf32>
    %22 = arith.maximumf %20, %21 : vector<8x128xf32>
    %23 = arith.truncf %22 : vector<8x128xf32> to vector<8x128xbf16>
    %c0_14 = arith.constant 0 : index
    %c0_15 = arith.constant 0 : index
    %24 = vector.load %arg9[%c0_14, %c0_15] : memref<1x128xbf16, #tpu.memory_space<vmem>>, vector<1x128xbf16>
    %cst_16 = arith.constant dense<0.000000e+00> : vector<1x8xf32>
    %25 = tpu.matmul %24, %23, %cst_16 {dimension_numbers = #tpu.dot_dimension_numbers<[1], [1], [0], [0], [0, 0, 1, 0], [], []>} : vector<1x128xbf16>, vector<8x128xbf16>, vector<1x8xf32> -> vector<1x8xf32>
    %c0_17 = arith.constant 0 : index
    %c0_18 = arith.constant 0 : index
    %26 = vector.load %arg10[%c0_17, %c0_18] : memref<1x1xf32, #tpu.memory_space<vmem>>, vector<1x1xf32>
    %27 = vector.broadcast %26 : vector<1x1xf32> to vector<1x8xf32>
    %28 = arith.addf %25, %27 : vector<1x8xf32>
    %c0_19 = arith.constant 0 : index
    %c0_20 = arith.constant 0 : index
    %29 = vector.load %arg11[%c0_19, %c0_20] : memref<1x8xf32, #tpu.memory_space<vmem>>, vector<1x8xf32>
    tpu.vector_store %arg11[%c0_19, %c0_20], %28 {strides = array<i32>} : memref<1x8xf32, #tpu.memory_space<vmem>>, vector<1x8xf32>,
    return
  }
  func.func @transform_0(%arg0: i32, %arg1: i32) -> (i32, i32) {
    %c0_i32 = arith.constant 0 : i32
    %c0_i32_0 = arith.constant 0 : i32
    return %arg0, %c0_i32 : i32, i32
  }
  func.func @transform_1(%arg0: i32, %arg1: i32) -> (i32, i32, i32) {
    %c0_i32 = arith.constant 0 : i32
    %c0_i32_0 = arith.constant 0 : i32
    return %arg1, %arg0, %c0_i32 : i32, i32, i32
  }
  func.func @transform_2(%arg0: i32, %arg1: i32) -> (i32, i32) {
    %c0_i32 = arith.constant 0 : i32
    %c0_i32_0 = arith.constant 0 : i32
    %c0_i32_1 = arith.constant 0 : i32
    return %c0_i32, %c0_i32_0 : i32, i32
  }
  func.func @transform_3(%arg0: i32, %arg1: i32) -> (i32, i32) {
    %c0_i32 = arith.constant 0 : i32
    %c0_i32_0 = arith.constant 0 : i32
    %c0_i32_1 = arith.constant 0 : i32
    return %c0_i32, %c0_i32_0 : i32, i32
  }
  func.func @transform_4(%arg0: i32, %arg1: i32) -> (i32, i32) {
    %c0_i32 = arith.constant 0 : i32
    %c0_i32_0 = arith.constant 0 : i32
    %c0_i32_1 = arith.constant 0 : i32
    return %c0_i32, %c0_i32_0 : i32, i32
  }
  func.func @transform_5(%arg0: i32, %arg1: i32) -> (i32, i32) {
    %c0_i32 = arith.constant 0 : i32
    %c0_i32_0 = arith.constant 0 : i32
    %c0_i32_1 = arith.constant 0 : i32
    return %c0_i32, %c0_i32_0 : i32, i32
  }
  func.func @transform_6(%arg0: i32, %arg1: i32) -> (i32, i32) {
    %c0_i32 = arith.constant 0 : i32
    %c0_i32_0 = arith.constant 0 : i32
    %c0_i32_1 = arith.constant 0 : i32
    return %c0_i32, %c0_i32_0 : i32, i32
  }
  func.func @transform_7(%arg0: i32, %arg1: i32) -> (i32, i32) {
    %c0_i32 = arith.constant 0 : i32
    %c0_i32_0 = arith.constant 0 : i32
    %c0_i32_1 = arith.constant 0 : i32
    return %c0_i32, %c0_i32_0 : i32, i32
  }
  func.func @transform_8(%arg0: i32, %arg1: i32) -> (i32, i32) {
    %c0_i32 = arith.constant 0 : i32
    %c0_i32_0 = arith.constant 0 : i32
    %c0_i32_1 = arith.constant 0 : i32
    return %c0_i32, %c0_i32_0 : i32, i32
  }
  func.func @transform_9(%arg0: i32, %arg1: i32) -> (i32, i32) {
    %c0_i32 = arith.constant 0 : i32
    return %arg1, %arg0 : i32, i32
  }
}

</mosaic_0001>

<llo_original>
// kernel: tpu_custom_call.1
$region0: #{tpu_custom_call.1}
  #allocation0 [shape = 'u32[]', space=smem, size = 0x4, offset = 0x4, fixed_abs, tag = 'smem constant byte address 0x4 - core index']
  #allocation1 [shape = 'u32[144,128]{1,0:T(1,128)}', space=vmem, size = 0x12000, scoped, tag = 'internal scratch']
  #allocation2 [shape = 'f32[8,128]{1,0:T(8,128)}', space=vmem, size = 0x1000, scoped, tag = 'scratch operand']
  #allocation3 [shape = 'f32[1,1]{1,0:T(1,128)S(1)}', space=vmem, size = 0x200, scoped, tag = 'scoped memory for tpu_custom_call.1']
  %s0 = inlined_call_operand.hbm [shape: f32[8,16], index: 0, kind: input, shape index: {}]
  %s1 = inlined_call_operand.hbm [shape: f32[1,8,8], index: 1, kind: input, shape index: {}]
  %s2 = inlined_call_operand.vmem [shape: bf16[16,128], index: 2, kind: input, shape index: {}]
  %s3 = inlined_call_operand.vmem [shape: bf16[8,128], index: 3, kind: input, shape index: {}]
  %s4 = inlined_call_operand.vmem [shape: f32[1,128], index: 4, kind: input, shape index: {}]
  %s5 = inlined_call_operand.hbm [shape: bf16[128,128], index: 5, kind: input, shape index: {}]
  %s6 = inlined_call_operand.vmem [shape: f32[1,128], index: 6, kind: input, shape index: {}]
  %s7 = inlined_call_operand.vmem [shape: bf16[1,128], index: 7, kind: input, shape index: {}]
  %s8 = inlined_call_operand.<no memory space> [shape: f32[1,1], index: 8, kind: input, shape index: {}]
  %s9 = inlined_call_operand.hbm [shape: f32[1,8], index: 9, kind: output, shape index: {}]
  %s10 = sld [smem:[#allocation0]]
  $region62: #{tpu_custom_call.1} parent=0
    _
  %s12 = ssub.s32 1, %s10
  %s13 = scalar_select 0, %s12, %s10
  %v14 = vstv %s8
  %15 = vst [vmem:[#allocation3] sm:$0x1] %v14
  $region1: #{tpu_custom_call.1} parent=0
    #allocation4 [shape = 'u8[4096]{0}', space=vmem, size = 0x1000, scoped, tag = 'input window, operand 0, single buffered']
    #allocation5 [shape = 's32[1]{0}', space=sflag, size = 0x4, scoped, tag = 'scoped memory for tpu_custom_call.1']
    #allocation6 [shape = 's32[1]{0}', space=sflag, size = 0x4, scoped, tag = 'scoped memory for tpu_custom_call.1']
    #allocation7 [shape = 'u8[4096]{0}', space=vmem, size = 0x1000, scoped, tag = 'input window, operand 1, single buffered']
    #allocation8 [shape = 's32[1]{0}', space=sflag, size = 0x4, scoped, tag = 'scoped memory for tpu_custom_call.1']
    #allocation9 [shape = 'u8[32768]{0}', space=vmem, size = 0x8000, scoped, tag = 'input window, operand 5, single buffered']
    #allocation10 [shape = 'u8[512]{0}', space=vmem, size = 0x400, scoped, tag = 'output window, operand 0, single buffered']
    %16 = vsyncpa [#allocation5], 0
    %17 = vsyncpa [#allocation8], 0
    %18 = vsyncpa [#allocation6], 0
    // Predicated region
    $region2: #{tpu_custom_call.1} parent=1 // pred_check
      _
    $region3: #{tpu_custom_call.1} parent=1 // pred_check_branch
      %20 = sbr.rel (0) target = $region5
    $region4: #{tpu_custom_call.1} parent=1 // pred_region
      %s22 = ssub.s32 128, 128
      %23 = vsyncadd [#allocation5], %s22
      %s25 = sshll.u32 [#allocation4], 4
      %s26 = int_to_ptr.vmem [resolvable:$true] %s25
      %28 = dma.hbm_to_vmem [thread:$0]  %s0, 128, %s26, [#allocation5]
    $region5: #{tpu_custom_call.1} parent=1 // pred_fallthru
      _
    // Predicated region
    $region6: #{tpu_custom_call.1} parent=1 // pred_check
      _
    $region7: #{tpu_custom_call.1} parent=1 // pred_check_branch
      %30 = sbr.rel (0) target = $region9
    $region8: #{tpu_custom_call.1} parent=1 // pred_region
      %s32 = ssub.s32 128, 128
      %33 = vsyncadd [#allocation8], %s32
      %s35 = sshll.u32 [#allocation7], 4
      %s36 = int_to_ptr.vmem [resolvable:$true] %s35
      %38 = dma.hbm_to_vmem [thread:$0]  %s1, 128, %s36, [#allocation8]
    $region9: #{tpu_custom_call.1} parent=1 // pred_fallthru
      _
    // Predicated region
    $region10: #{tpu_custom_call.1} parent=1 // pred_check
      _
    $region11: #{tpu_custom_call.1} parent=1 // pred_check_branch
      %40 = sbr.rel (0) target = $region13
    $region12: #{tpu_custom_call.1} parent=1 // pred_region
      _
    $region13: #{tpu_custom_call.1} parent=1 // pred_fallthru
      _
    // Predicated region
    $region14: #{tpu_custom_call.1} parent=1 // pred_check
      _
    $region15: #{tpu_custom_call.1} parent=1 // pred_check_branch
      %42 = sbr.rel (0) target = $region17
    $region16: #{tpu_custom_call.1} parent=1 // pred_region
      _
    $region17: #{tpu_custom_call.1} parent=1 // pred_fallthru
      _
    // Predicated region
    $region18: #{tpu_custom_call.1} parent=1 // pred_check
      _
    $region19: #{tpu_custom_call.1} parent=1 // pred_check_branch
      %44 = sbr.rel (0) target = $region21
    $region20: #{tpu_custom_call.1} parent=1 // pred_region
      _
    $region21: #{tpu_custom_call.1} parent=1 // pred_fallthru
      _
    // Predicated region
    $region22: #{tpu_custom_call.1} parent=1 // pred_check
      _
    $region23: #{tpu_custom_call.1} parent=1 // pred_check_branch
      %46 = sbr.rel (0) target = $region25
    $region24: #{tpu_custom_call.1} parent=1 // pred_region
      %s48 = ssub.s32 1024, 1024
      %49 = vsyncadd [#allocation8], %s48
      %s50 = sshll.u32 [#allocation9], 4
      %s51 = int_to_ptr.vmem [resolvable:$true] %s50
      %56 = dma.hbm_to_vmem [thread:$0]  %s5, 1024, %s51, [#allocation8], 64, 64, 4
    $region25: #{tpu_custom_call.1} parent=1 // pred_fallthru
      _
    // Predicated region
    $region26: #{tpu_custom_call.1} parent=1 // pred_check
      _
    $region27: #{tpu_custom_call.1} parent=1 // pred_check_branch
      %58 = sbr.rel (0) target = $region29
    $region28: #{tpu_custom_call.1} parent=1 // pred_region
      _
    $region29: #{tpu_custom_call.1} parent=1 // pred_fallthru
      _
    // Predicated region
    $region30: #{tpu_custom_call.1} parent=1 // pred_check
      _
    $region31: #{tpu_custom_call.1} parent=1 // pred_check_branch
      %60 = sbr.rel (0) target = $region33
    $region32: #{tpu_custom_call.1} parent=1 // pred_region
      _
    $region33: #{tpu_custom_call.1} parent=1 // pred_fallthru
      _
    // Predicated region
    $region34: #{tpu_custom_call.1} parent=1 // pred_check
      _
    $region35: #{tpu_custom_call.1} parent=1 // pred_check_branch
      %62 = sbr.rel (0) target = $region37
    $region36: #{tpu_custom_call.1} parent=1 // pred_region
      _
    $region37: #{tpu_custom_call.1} parent=1 // pred_fallthru
      _
    // Predicated region
    $region38: #{tpu_custom_call.1} parent=1 // pred_check
      _
    $region39: #{tpu_custom_call.1} parent=1 // pred_check_branch
      %64 = sbr.rel (0) target = $region41
    $region40: #{tpu_custom_call.1} parent=1 // pred_region
      %65 = dma.done [#allocation5], 128
    $region41: #{tpu_custom_call.1} parent=1 // pred_fallthru
      _
    // Predicated region
    $region42: #{tpu_custom_call.1} parent=1 // pred_check
      _
    $region43: #{tpu_custom_call.1} parent=1 // pred_check_branch
      %67 = sbr.rel (0) target = $region45
    $region44: #{tpu_custom_call.1} parent=1 // pred_region
      %68 = dma.done [#allocation8], 128
    $region45: #{tpu_custom_call.1} parent=1 // pred_fallthru
      _
    // Predicated region
    $region46: #{tpu_custom_call.1} parent=1 // pred_check
      _
    $region47: #{tpu_custom_call.1} parent=1 // pred_check_branch
      %70 = sbr.rel (0) target = $region49
    $region48: #{tpu_custom_call.1} parent=1 // pred_region
      %71 = dma.done [#allocation8], 1024
    $region49: #{tpu_custom_call.1} parent=1 // pred_fallthru
      _
    %p73 = scmp.eq.s32.totalorder 0, 0
    // Predicated region
    $region50: #{tpu_custom_call.1} parent=1 // pred_check
      %p74 = pneg %p73
    $region51: #{tpu_custom_call.1} parent=1 // pred_check_branch
      %76 = sbr.rel (%p74) target = $region53
    $region52: #{tpu_custom_call.1} parent=1 // pred_region
      %v77 = vld [vmem:[#allocation4] sm:$0xff]
      %v78 = vpack.c.bf16 %v77, %v77
      %v79 = vld [vmem:[%s2] sm:$0xf]
      %v80 = vld [vmem:[%s2 + $0x4] sm:$0xf]
      %v81 = vld [vmem:[%s4] sm:$0x1]
      %v83 = vlaneseq
      %v84 = vshrl.u32 %v83, 7
      %v85 = vsub.s32 0, %v84
      %v86 = vrot.slane %v81, %v85
      %v90 = vunpack.c.l.b16 %v79
      %v91 = vunpack.c.l.b16 %v80
      %v92 = vpack.c.b16 %v91, %v90
      %vm94 = vcmask 130048
      %v96 = vsel %vm94, %v78, 0
      %98 = vmatprep.subr.bf16.mxu0 0
      %99 = vmatpush1.bf16.msra.mxu0 %v92
      %100 = vmatprep.subr.bf16.mxu0 0
      %101 = vmatpush1.bf16.msra.mxu0 0
      %102 = vmatprep.subr.bf16.mxu0 0
      %103 = vmatpush1.bf16.msra.mxu0 0
      %104 = vmatprep.subr.bf16.mxu0 0
      %105 = vmatpush1.bf16.msra.mxu0 0
      %106 = vmatprep.subr.bf16.mxu0 0
      %107 = vmatpush1.bf16.msra.mxu0 0
      %108 = vmatprep.subr.bf16.mxu0 0
      %109 = vmatpush1.bf16.msra.mxu0 0
      %110 = vmatprep.subr.bf16.mxu0 0
      %111 = vmatpush1.bf16.msra.mxu0 0
      %112 = vmatprep.subr.bf16.mxu0 0
      %113 = vmatpush1.bf16.msra.mxu0 0
      %114 = vmatprep.subr.bf16.mxu0 0
      %115 = vmatpush1.bf16.msra.mxu0 0
      %116 = vmatprep.subr.bf16.mxu0 0
      %117 = vmatpush1.bf16.msra.mxu0 0
      %118 = vmatprep.subr.bf16.mxu0 0
      %119 = vmatpush1.bf16.msra.mxu0 0
      %120 = vmatprep.subr.bf16.mxu0 0
      %121 = vmatpush1.bf16.msra.mxu0 0
      %122 = vmatprep.subr.bf16.mxu0 0
      %123 = vmatpush1.bf16.msra.mxu0 0
      %124 = vmatprep.subr.bf16.mxu0 0
      %125 = vmatpush1.bf16.msra.mxu0 0
      %126 = vmatprep.subr.bf16.mxu0 0
      %127 = vmatpush1.bf16.msra.mxu0 0
      %128 = vmatprep.subr.bf16.mxu0 0
      %129 = vmatpush1.bf16.msra.mxu0 0
      %130 = vmatprep.mubr.bf16.mxu0 0
      %131 = vmatmul.mubr.bf16.gmra.mrb[0].mxu0 %v96
      %v132 = vpop.f32.mrb[0].mxu0
      %v133 = vadd.f32 %v86, %v132
      %v134 = vpop.f32.mrb[0].mxu0
      %v135 = vpop.f32.mrb[0].mxu0
      %v136 = vpop.f32.mrb[0].mxu0
      %137 = vdwg.mxu0
      %138 = vst [vmem:[#allocation2] sm:$0xff] %v133
    $region53: #{tpu_custom_call.1} parent=1 // pred_fallthru
      _
    %v139 = vld [vmem:[#allocation7] sm:$0xff]
    %v140 = vpack.c.bf16 %v139, %v139
    %v141 = vld [vmem:[%s3] sm:$0xf]
    %vm142 = vcmask 64512
    %v144 = vsel %vm142, %v140, 0
    %vm146 = vcmask 1043456
    %v148 = vsel %vm146, %v141, 0
    %150 = vmatprep.subr.bf16.mxu0 0
    %151 = vmatpush1.bf16.msra.mxu0 %v148
    %152 = vmatprep.subr.bf16.mxu0 0
    %153 = vmatpush1.bf16.msra.mxu0 0
    %154 = vmatprep.subr.bf16.mxu0 0
    %155 = vmatpush1.bf16.msra.mxu0 0
    %156 = vmatprep.subr.bf16.mxu0 0
    %157 = vmatpush1.bf16.msra.mxu0 0
    %158 = vmatprep.subr.bf16.mxu0 0
    %159 = vmatpush1.bf16.msra.mxu0 0
    %160 = vmatprep.subr.bf16.mxu0 0
    %161 = vmatpush1.bf16.msra.mxu0 0
    %162 = vmatprep.subr.bf16.mxu0 0
    %163 = vmatpush1.bf16.msra.mxu0 0
    %164 = vmatprep.subr.bf16.mxu0 0
    %165 = vmatpush1.bf16.msra.mxu0 0
    %166 = vmatprep.subr.bf16.mxu0 0
    %167 = vmatpush1.bf16.msra.mxu0 0
    %168 = vmatprep.subr.bf16.mxu0 0
    %169 = vmatpush1.bf16.msra.mxu0 0
    %170 = vmatprep.subr.bf16.mxu0 0
    %171 = vmatpush1.bf16.msra.mxu0 0
    %172 = vmatprep.subr.bf16.mxu0 0
    %173 = vmatpush1.bf16.msra.mxu0 0
    %174 = vmatprep.subr.bf16.mxu0 0
    %175 = vmatpush1.bf16.msra.mxu0 0
    %176 = vmatprep.subr.bf16.mxu0 0
    %177 = vmatpush1.bf16.msra.mxu0 0
    %178 = vmatprep.subr.bf16.mxu0 0
    %179 = vmatpush1.bf16.msra.mxu0 0
    %180 = vmatprep.subr.bf16.mxu0 0
    %181 = vmatpush1.bf16.msra.mxu0 0
    %182 = vmatprep.mubr.bf16.mxu0 0
    %183 = vmatmul.mubr.bf16.gmra.mrb[0].mxu0 %v144
    %v184 = vpop.f32.mrb[0].mxu0
    %v185 = vadd.f32 0.0, %v184
    %v186 = vpop.f32.mrb[0].mxu0
    %v187 = vpop.f32.mrb[0].mxu0
    %v188 = vpop.f32.mrb[0].mxu0
    %189 = vdwg.mxu0
    %v190 = vld [vmem:[#allocation2] sm:$0xff]
    %v191 = vadd.f32 %v185, %v190
    %v192 = vmax.f32 %v191, 0.0
    %v193 = vpack.c.bf16 %v192, %v192
    %v194 = vld [vmem:[#allocation9] sm:$0xf]
    %v195 = vld [vmem:[#allocation9 + $0x4] sm:$0xf]
    %v196 = vld [vmem:[#allocation9 + $0x8] sm:$0xf]
    %v197 = vld [vmem:[#allocation9 + $0xc] sm:$0xf]
    %v198 = vld [vmem:[#allocation9 + $0x10] sm:$0xf]
    %v199 = vld [vmem:[#allocation9 + $0x14] sm:$0xf]
    %v200 = vld [vmem:[#allocation9 + $0x18] sm:$0xf]
    %v201 = vld [vmem:[#allocation9 + $0x1c] sm:$0xf]
    %v202 = vld [vmem:[#allocation9 + $0x20] sm:$0xf]
    %v203 = vld [vmem:[#allocation9 + $0x24] sm:$0xf]
    %v204 = vld [vmem:[#allocation9 + $0x28] sm:$0xf]
    %v205 = vld [vmem:[#allocation9 + $0x2c] sm:$0xf]
    %v206 = vld [vmem:[#allocation9 + $0x30] sm:$0xf]
    %v207 = vld [vmem:[#allocation9 + $0x34] sm:$0xf]
    %v208 = vld [vmem:[#allocation9 + $0x38] sm:$0xf]
    %v209 = vld [vmem:[#allocation9 + $0x3c] sm:$0xf]
    %v210 = vld [vmem:[%s6] sm:$0x1]
    %v212 = vlaneseq
    %v213 = vshrl.u32 %v212, 7
    %v214 = vsub.s32 0, %v213
    %v215 = vrot.slane %v210, %v214
    %v233 = vunpack.c.l.b16 %v194
    %v234 = vunpack.c.l.b16 %v195
    %v235 = vunpack.c.l.b16 %v196
    %v236 = vunpack.c.l.b16 %v197
    %v237 = vunpack.c.l.b16 %v198
    %v238 = vunpack.c.l.b16 %v199
    %v239 = vunpack.c.l.b16 %v200
    %v240 = vunpack.c.l.b16 %v201
    %v241 = vunpack.c.l.b16 %v202
    %v242 = vunpack.c.l.b16 %v203
    %v243 = vunpack.c.l.b16 %v204
    %v244 = vunpack.c.l.b16 %v205
    %v245 = vunpack.c.l.b16 %v206
    %v246 = vunpack.c.l.b16 %v207
    %v247 = vunpack.c.l.b16 %v208
    %v248 = vunpack.c.l.b16 %v209
    %v249 = vpack.c.b16 %v234, %v233
    %v250 = vpack.c.b16 %v236, %v235
    %v251 = vpack.c.b16 %v238, %v237
    %v252 = vpack.c.b16 %v240, %v239
    %v253 = vpack.c.b16 %v242, %v241
    %v254 = vpack.c.b16 %v244, %v243
    %v255 = vpack.c.b16 %v246, %v245
    %v256 = vpack.c.b16 %v248, %v247
    %265 = vmatprep.subr.bf16.mxu0 0
    %266 = vmatpush1.bf16.msra.mxu0 %v249
    %267 = vmatprep.subr.bf16.mxu0 0
    %268 = vmatpush1.bf16.msra.mxu0 %v250
    %269 = vmatprep.subr.bf16.mxu0 0
    %270 = vmatpush1.bf16.msra.mxu0 %v251
    %271 = vmatprep.subr.bf16.mxu0 0
    %272 = vmatpush1.bf16.msra.mxu0 %v252
    %273 = vmatprep.subr.bf16.mxu0 0
    %274 = vmatpush1.bf16.msra.mxu0 %v253
    %275 = vmatprep.subr.bf16.mxu0 0
    %276 = vmatpush1.bf16.msra.mxu0 %v254
    %277 = vmatprep.subr.bf16.mxu0 0
    %278 = vmatpush1.bf16.msra.mxu0 %v255
    %279 = vmatprep.subr.bf16.mxu0 0
    %280 = vmatpush1.bf16.msra.mxu0 %v256
    %281 = vmatprep.subr.bf16.mxu0 0
    %282 = vmatpush1.bf16.msra.mxu0 0
    %283 = vmatprep.subr.bf16.mxu0 0
    %284 = vmatpush1.bf16.msra.mxu0 0
    %285 = vmatprep.subr.bf16.mxu0 0
    %286 = vmatpush1.bf16.msra.mxu0 0
    %287 = vmatprep.subr.bf16.mxu0 0
    %288 = vmatpush1.bf16.msra.mxu0 0
    %289 = vmatprep.subr.bf16.mxu0 0
    %290 = vmatpush1.bf16.msra.mxu0 0
    %291 = vmatprep.subr.bf16.mxu0 0
    %292 = vmatpush1.bf16.msra.mxu0 0
    %293 = vmatprep.subr.bf16.mxu0 0
    %294 = vmatpush1.bf16.msra.mxu0 0
    %295 = vmatprep.subr.bf16.mxu0 0
    %296 = vmatpush1.bf16.msra.mxu0 0
    %297 = vmatprep.mubr.bf16.mxu0 0
    %298 = vmatmul.mubr.bf16.gmra.mrb[0].mxu0 %v193
    %v299 = vpop.f32.mrb[0].mxu0
    %v300 = vadd.f32 %v215, %v299
    %v301 = vpop.f32.mrb[0].mxu0
    %v302 = vpop.f32.mrb[0].mxu0
    %v303 = vpop.f32.mrb[0].mxu0
    %304 = vdwg.mxu0
    %v305 = vmax.f32 %v300, 0.0
    %v306 = vpack.c.bf16 %v305, %v305
    %v307 = vld [vmem:[%s7] sm:$0x1]
    %v308 = vld [vmem:[#allocation3] sm:$0x1]
    %310 = vset.pattern.permute.xlu0 0
    %311 = vperm.xlu0 %310, %v308
    %v312 = vpop.permute.xlu0 %311
    %v314 = vlaneseq
    %v315 = vshrl.u32 %v314, 7
    %v316 = vsub.s32 0, %v315
    %v317 = vrot.slane %v312, %v316
    %318 = vmatprep.subr.bf16.mxu0 0
    %319 = vmatpush1.bf16.xpose.msra.mxu0 %v306
    %320 = vmatprep.subr.bf16.mxu0 0
    %321 = vmatpush1.bf16.xpose.msra.mxu0 0
    %322 = vmatprep.subr.bf16.mxu0 0
    %323 = vmatpush1.bf16.xpose.msra.mxu0 0
    %324 = vmatprep.subr.bf16.mxu0 0
    %325 = vmatpush1.bf16.xpose.msra.mxu0 0
    %326 = vmatprep.subr.bf16.mxu0 0
    %327 = vmatpush1.bf16.xpose.msra.mxu0 0
    %328 = vmatprep.subr.bf16.mxu0 0
    %329 = vmatpush1.bf16.xpose.msra.mxu0 0
    %330 = vmatprep.subr.bf16.mxu0 0
    %331 = vmatpush1.bf16.xpose.msra.mxu0 0
    %332 = vmatprep.subr.bf16.mxu0 0
    %333 = vmatpush1.bf16.xpose.msra.mxu0 0
    %334 = vmatprep.subr.bf16.mxu0 0
    %335 = vmatpush1.bf16.xpose.msra.mxu0 0
    %336 = vmatprep.subr.bf16.mxu0 0
    %337 = vmatpush1.bf16.xpose.msra.mxu0 0
    %338 = vmatprep.subr.bf16.mxu0 0
    %339 = vmatpush1.bf16.xpose.msra.mxu0 0
    %340 = vmatprep.subr.bf16.mxu0 0
    %341 = vmatpush1.bf16.xpose.msra.mxu0 0
    %342 = vmatprep.subr.bf16.mxu0 0
    %343 = vmatpush1.bf16.xpose.msra.mxu0 0
    %344 = vmatprep.subr.bf16.mxu0 0
    %345 = vmatpush1.bf16.xpose.msra.mxu0 0
    %346 = vmatprep.subr.bf16.mxu0 0
    %347 = vmatpush1.bf16.xpose.msra.mxu0 0
    %348 = vmatprep.subr.bf16.mxu0 0
    %349 = vmatpush1.bf16.xpose.msra.mxu0 0
    %350 = vmatprep.mubr.bf16.mxu0 0
    %351 = vmatmul.mubr.bf16.gmra.mrb[0].mxu0 %v307
    %v352 = vpop.f32.mrb[0].mxu0
    %v353 = vadd.f32 %v317, %v352
    %v354 = vpop.f32.mrb[0].mxu0
    %v355 = vpop.f32.mrb[0].mxu0
    %v356 = vpop.f32.mrb[0].mxu0
    %357 = vdwg.mxu0
    %vm358 = vcmask 57344
    %359 = vst.msk [vmem:[#allocation10] sm:$0x1] %vm358, %v353
    // Predicated region
    $region54: #{tpu_custom_call.1} parent=1 // pred_check
      _
    $region55: #{tpu_custom_call.1} parent=1 // pred_check_branch
      %361 = sbr.rel (0) target = $region57
    $region56: #{tpu_custom_call.1} parent=1 // pred_region
      %s363 = ssub.s32 16, 16
      %364 = vsyncadd [#allocation6], %s363
      %s366 = sshll.u32 [#allocation10], 4
      %s367 = int_to_ptr.vmem [resolvable:$true] %s366
      %369 = dma.vmem_to_hbm [thread:$0]  %s367, 16, %s9, [#allocation6]
    $region57: #{tpu_custom_call.1} parent=1 // pred_fallthru
      _
    // Predicated region
    $region58: #{tpu_custom_call.1} parent=1 // pred_check
      _
    $region59: #{tpu_custom_call.1} parent=1 // pred_check_branch
      %371 = sbr.rel (0) target = $region61
    $region60: #{tpu_custom_call.1} parent=1 // pred_region
      %372 = dma.done [#allocation6], 16
    $region61: #{tpu_custom_call.1} parent=1 // pred_fallthru
      _
    %373 = vsyncpa [#allocation5], 1
    %374 = vsyncpa [#allocation8], 1
    %375 = vsyncpa [#allocation6], 1

</llo_original>
